<compile_context>
chip_gen: v6e
topology: v6e:2x2x1
jax: 0.10.0
libtpu: 0.0.40
codegen_flags: <defaults>
</compile_context>

<pallas_src>
import jax
import jax.numpy as jnp
from jax import lax
from jax.experimental import pallas as pl
from jax.experimental.pallas import tpu as pltpu


# ----------------------------------------------------------------------------
# Kernels
# ----------------------------------------------------------------------------
def _word_embed2_kernel(x_ref, w1_ref, b1_ref, w2_ref, b2_ref, o_ref, h_ref):
    """Two-matmul path. h_ref: (tb, dim_p) f32 VMEM scratch, carried over j."""
    # "NT" contraction: contract last dims of both operands, i.e. x @ W.T,
    # keeping W in its PyTorch (out, in) layout (transpose done by the MXU).
    nt = (((1,), (1,)), ((), ()))

    # lin1 only once per batch tile (j == 0); reused for every output-vocab tile.
    @pl.when(pl.program_id(1) == 0)
    def _():
        h = lax.dot_general(x_ref[...].astype(w1_ref.dtype), w1_ref[...], nt,
                            preferred_element_type=jnp.float32)
        h_ref[...] = h + b1_ref[...]                      # (1, dim_p) broadcast

    # lin2 for this output-vocab tile.
    y = lax.dot_general(h_ref[...].astype(w2_ref.dtype), w2_ref[...], nt,
                        preferred_element_type=jnp.float32)
    o_ref[...] = (y + b2_ref[...]).astype(o_ref.dtype)    # (1, tn) broadcast


def _word_embed1_kernel(x_ref, w_ref, b_ref, o_ref):
    """Folded single-matmul path: y = x @ W_eff^T + b_eff."""
    nt = (((1,), (1,)), ((), ()))
    y = lax.dot_general(x_ref[...].astype(w_ref.dtype), w_ref[...], nt,
                        preferred_element_type=jnp.float32)
    o_ref[...] = (y + b_ref[...]).astype(o_ref.dtype)


# ----------------------------------------------------------------------------
# Helpers
# ----------------------------------------------------------------------------
def _round_up(n, m):
    return ((n + m - 1) // m) * m


def _largest_divisor_tile(total, want, quantum):
    """Largest multiple of `quantum` that divides `total` and is <= max(want, quantum)."""
    want = max(want, quantum)
    m = total // quantum
    best = quantum
    for d in range(1, m + 1):
        if m % d == 0 and d * quantum <= want:
            best = d * quantum
    return best


def _vmem_capacity_bytes():
    try:
        cap = int(pltpu.get_tpu_info().vmem_capacity_bytes)
        if cap > 0:
            return cap
    except Exception:
        pass
    return 64 * 1024 * 1024            # conservative fallback (v7x per-TC)


def _supports_pipeline_mode():
    if not hasattr(pl, "Buffered"):
        return False
    try:
        pl.BlockSpec((8, 128), lambda i, j: (0, 0), pipeline_mode=pl.Buffered(1))
        return True
    except Exception:
        return False


_PIPELINE_MODE_OK = _supports_pipeline_mode()


def _resident_spec(shape, index_map):
    """BlockSpec for a constant-index (resident) input; single-buffered if possible."""
    if _PIPELINE_MODE_OK:
        return pl.BlockSpec(shape, index_map, pipeline_mode=pl.Buffered(1))
    return pl.BlockSpec(shape, index_map)


# ----------------------------------------------------------------------------
# One-time (init-path) parameter prep
# ----------------------------------------------------------------------------
def prepare_params(w1, b1, w2, b2, *, compute_dtype=jnp.float32, lane=128,
                   fold_small_vocab=True, fold_threshold=256):
    """Runs OUTSIDE the per-call hot path.

    Keeps PyTorch (out, in) layout, zero-pads dim/vocab to lane multiples
    (padded rows/cols are zero, so exact), casts weights to the MXU compute
    dtype, keeps biases in f32. For small vocab (<= fold_threshold) the two
    Linears are folded into one vocab x vocab matmul at init time (f32 fold,
    cast afterwards).

    Note: on v5e prefer compute_dtype=jnp.bfloat16 (no fast f32 MXU path).
    """
    dim, vocab = w1.shape
    assert w2.shape == (vocab, dim)
    assert b1.shape == (dim,) and b2.shape == (vocab,)

    dim_p = _round_up(dim, lane)
    k_p = _round_up(vocab, lane)      # contraction width (input vocab)
    n_p = _round_up(vocab, lane)      # output width (output vocab)

    common = dict(dim=dim, vocab=vocab, compute_dtype=compute_dtype,
                  dim_p=dim_p, k_p=k_p, n_p=n_p)

    if fold_small_vocab and vocab <= fold_threshold:
        # y = (x @ W1^T + b1) @ W2^T + b2 = x @ (W2 @ W1)^T + (W2 @ b1 + b2)
        w_eff = jnp.dot(w2.astype(jnp.float32), w1.astype(jnp.float32))       # (vocab, vocab)
        b_eff = jnp.dot(w2.astype(jnp.float32), b1.astype(jnp.float32)) \
            + b2.astype(jnp.float32)
        w_p = jnp.zeros((n_p, k_p), compute_dtype).at[:vocab, :vocab].set(
            w_eff.astype(compute_dtype))
        b_p = jnp.zeros((1, n_p), jnp.float32).at[:, :vocab].set(b_eff[None, :])
        return dict(mode="folded", w=w_p, b=b_p, **common)

    w1p = jnp.zeros((dim_p, k_p), compute_dtype).at[:dim, :vocab].set(
        w1.astype(compute_dtype))
    b1p = jnp.zeros((1, dim_p), jnp.float32).at[:, :dim].set(
        b1.astype(jnp.float32)[None, :])
    w2p = jnp.zeros((n_p, dim_p), compute_dtype).at[:vocab, :dim].set(
        w2.astype(compute_dtype))
    b2p = jnp.zeros((1, n_p), jnp.float32).at[:, :vocab].set(
        b2.astype(jnp.float32)[None, :])
    return dict(mode="two_matmul", w1=w1p, b1=b1p, w2=w2p, b2=b2p, **common)


# ----------------------------------------------------------------------------
# Wrapper
# ----------------------------------------------------------------------------
def word_embed(x, params, *, tb=None, tn=None):
    """x: (B, vocab) activations (native dtype); params from prepare_params()."""
    mode = params["mode"]
    vocab = params["vocab"]
    cdt = params["compute_dtype"]
    dim_p, k_p, n_p = params["dim_p"], params["k_p"], params["n_p"]

    B, K = x.shape
    assert K == vocab, f"expected x last dim {vocab}, got {K}"

    cbytes = jnp.dtype(cdt).itemsize
    xbytes = jnp.dtype(x.dtype).itemsize
    obytes = xbytes

    # Per-generation VMEM budget (~51 MiB on v7x, ~102 MiB on v5e/v6e).
    budget = int(_vmem_capacity_bytes() * 0.8)
    big_vmem = budget > (64 << 20)

    # Default tiles: bigger on 128 MiB chips (amortize per-step overhead).
    if tb is None:
        tb = 512 if big_vmem else 256
    if tn is None:
        tn = 2048 if big_vmem else 512

    # Sublane quantum: bf16 packs 16 rows per vreg; f32 packs 8.
    q = 16 if cbytes < 4 else 8

    Bq = _round_up(B, q)
    tb = max(q, min(_round_up(tb, q), Bq))
    # Megacore (v7x has 2 TCs): keep >= 2 batch tiles when the batch allows it,
    # since after the h-scratch change only the batch axis is "parallel".
    if Bq // tb < 2 and Bq >= 2 * q:
        tb = max(q, _round_up(max(Bq // 2, q), q))

    # Lane-dense output tile: multiple of 128 dividing n_p.
    tn = _largest_divisor_tile(n_p, tn, 128)

    def est_bytes(tb_, tn_):
        if mode == "two_matmul":
            w1_bufs = 1 if _PIPELINE_MODE_OK else 2
            return (2 * tb_ * k_p * xbytes              # x tile (double-buffered)
                    + w1_bufs * dim_p * k_p * cbytes    # w1 (resident)
                    + w1_bufs * dim_p * 4               # b1 (resident)
                    + 2 * tn_ * dim_p * cbytes          # w2 tile
                    + 2 * tn_ * 4                       # b2 tile
                    + 2 * tb_ * tn_ * obytes            # out tile
                    + tb_ * dim_p * 4)                  # h scratch
        return (2 * tb_ * k_p * xbytes                  # x tile
                + 2 * tn_ * k_p * cbytes                # w_eff tile
                + 2 * tn_ * 4                           # b_eff tile
                + 2 * tb_ * tn_ * obytes)               # out tile

    # Adaptive shrink so large-vocab configs fit v7x's 64 MiB VMEM.
    while est_bytes(tb, tn) > budget:
        if tn > 128:
            tn = _largest_divisor_tile(n_p, tn // 2, 128)
        elif tb > q:
            tb = max(q, _round_up(tb // 2, q))
        else:
            break

    Bp = _round_up(B, tb)
    xp = x
    if Bp != B or k_p != K:
        xp = jnp.pad(x, ((0, Bp - B), (0, k_p - K)))

    grid = (Bp // tb, n_p // tn)

    est = est_bytes(tb, tn)
    vmem_limit = int(min(max(int(est * 1.25) + (2 << 20), 16 << 20), budget))

    if mode == "two_matmul":
        flops = 2 * Bp * k_p * dim_p + 2 * Bp * dim_p * n_p
        bytes_accessed = (Bp * k_p * xbytes + dim_p * k_p * cbytes + dim_p * 4
                          + n_p * dim_p * cbytes + n_p * 4 + Bp * n_p * obytes)
    else:
        flops = 2 * Bp * k_p * n_p
        bytes_accessed = (Bp * k_p * xbytes + n_p * k_p * cbytes + n_p * 4
                          + Bp * n_p * obytes)
    cost = pl.CostEstimate(flops=flops, transcendentals=0,
                           bytes_accessed=bytes_accessed)

    if mode == "folded":
        out = pl.pallas_call(
            _word_embed1_kernel,
            out_shape=jax.ShapeDtypeStruct((Bp, n_p), x.dtype),
            grid_spec=pltpu.PrefetchScalarGridSpec(
                num_scalar_prefetch=0,
                grid=grid,
                in_specs=[
                    pl.BlockSpec((tb, k_p), lambda i, j: (i, 0)),    # x
                    pl.BlockSpec((tn, k_p), lambda i, j: (j, 0)),    # W_eff tile
                    pl.BlockSpec((1, tn), lambda i, j: (0, j)),      # b_eff tile
                ],
                out_specs=pl.BlockSpec((tb, tn), lambda i, j: (i, j)),
            ),
            compiler_params=pltpu.CompilerParams(
                dimension_semantics=("parallel", "parallel"),
                vmem_limit_bytes=vmem_limit,
            ),
            cost_estimate=cost,
        )(xp, params["w"], params["b"])
    else:
        out = pl.pallas_call(
            _word_embed2_kernel,
            out_shape=jax.ShapeDtypeStruct((Bp, n_p), x.dtype),
            grid_spec=pltpu.PrefetchScalarGridSpec(
                num_scalar_prefetch=0,
                grid=grid,
                in_specs=[
                    pl.BlockSpec((tb, k_p), lambda i, j: (i, 0)),        # x
                    _resident_spec((dim_p, k_p), lambda i, j: (0, 0)),   # w1 (resident)
                    _resident_spec((1, dim_p), lambda i, j: (0, 0)),     # b1 (resident)
                    pl.BlockSpec((tn, dim_p), lambda i, j: (j, 0)),      # w2 tile
                    pl.BlockSpec((1, tn), lambda i, j: (0, j)),          # b2 tile
                ],
                out_specs=pl.BlockSpec((tb, tn), lambda i, j: (i, j)),
                scratch_shapes=[pltpu.VMEM((tb, dim_p), jnp.float32)],   # h scratch
            ),
            compiler_params=pltpu.CompilerParams(
                # j axis MUST be arbitrary: h scratch carries across j tiles.
                dimension_semantics=("parallel", "arbitrary"),
                vmem_limit_bytes=vmem_limit,
            ),
            cost_estimate=cost,
        )(xp, params["w1"], params["b1"], params["w2"], params["b2"])

    return out[:B, :vocab]


# ----------------------------------------------------------------------------
# Self-test
# ----------------------------------------------------------------------------
if __name__ == "__main__":
    # Small shapes consistent with the module: batch=8, vocab=128, dim=32.
    B, vocab, dim = 8, 128, 32

    key = jax.random.PRNGKey(0)
    kx, kw1, kb1, kw2, kb2 = jax.random.split(key, 5)

    x = jax.random.normal(kx, (B, vocab), dtype=jnp.float32)
    # Deterministic nn.Linear-style uniform init.
    bound1 = 1.0 / (vocab ** 0.5)
    w1 = jax.random.uniform(kw1, (dim, vocab), jnp.float32, -bound1, bound1)
    b1 = jax.random.uniform(kb1, (dim,), jnp.float32, -bound1, bound1)
    bound2 = 1.0 / (dim ** 0.5)
    w2 = jax.random.uniform(kw2, (vocab, dim), jnp.float32, -bound2, bound2)
    b2 = jax.random.uniform(kb2, (vocab,), jnp.float32, -bound2, bound2)

    ref = (x @ w1.T + b1) @ w2.T + b2

    # --- f32, folded single-matmul path (default for this small vocab) ------
    params_fold = prepare_params(w1, b1, w2, b2, compute_dtype=jnp.float32)
    assert params_fold["mode"] == "folded"
    out_fold = jax.block_until_ready(word_embed(x, params_fold))
    assert out_fold.shape == (B, vocab)
    assert jnp.allclose(out_fold, ref, atol=1e-4, rtol=1e-4), \
        "folded f32 mismatch vs reference"

    # --- f32, two-matmul path (what large-vocab configs run) ----------------
    params_f32 = prepare_params(w1, b1, w2, b2, compute_dtype=jnp.float32,
                                fold_small_vocab=False)
    out_f32 = jax.block_until_ready(word_embed(x, params_f32))
    assert out_f32.shape == (B, vocab)
    assert jnp.allclose(out_f32, ref, atol=1e-4, rtol=1e-4), \
        "two-matmul f32 mismatch vs reference"

    # --- bf16 MXU path (production config): bf16 operands, f32 accumulation -
    params_bf16 = prepare_params(w1, b1, w2, b2, compute_dtype=jnp.bfloat16,
                                 fold_small_vocab=False)
    out_bf = jax.block_until_ready(word_embed(x, params_bf16))
    xb, w1b, w2b = (a.astype(jnp.bfloat16) for a in (x, w1, w2))
    h_ref = jnp.dot(xb, w1b.T, preferred_element_type=jnp.float32) + b1
    ref_bf = (jnp.dot(h_ref.astype(jnp.bfloat16), w2b.T,
                      preferred_element_type=jnp.float32) + b2).astype(x.dtype)
    assert out_bf.shape == (B, vocab)
    assert jnp.allclose(out_bf, ref_bf, atol=2e-2, rtol=2e-2), \
        "bf16 mismatch vs reference"

    print("KERNEL_OK")
</pallas_src>

<mosaic_0001>
module attributes {stable_mosaic.version = 11 : i64} {
  func.func @_word_embed1_kernel(%arg0: i32, %arg1: i32, %arg2: memref<8x128xf32, #tpu.memory_space<vmem>>, %arg3: memref<128x128xf32, #tpu.memory_space<vmem>>, %arg4: memref<1x128xf32, #tpu.memory_space<vmem>>, %arg5: memref<8x128xf32, #tpu.memory_space<vmem>>) attributes {dimension_semantics = [#tpu.dimension_semantics<parallel>, #tpu.dimension_semantics<parallel>], iteration_bounds = array<i64: 1, 1>, scalar_prefetch = 0 : i64, scratch_operands = 0 : i64, tpu.core_type = #tpu.core_type<tc>, window_params = [{transform_indices = @transform_0, window_bounds = array<i64: 8, 128>}, {transform_indices = @transform_1, window_bounds = array<i64: 128, 128>}, {transform_indices = @transform_2, window_bounds = array<i64: 1, 128>}, {transform_indices = @transform_3, window_bounds = array<i64: 8, 128>}]} {
    %c0 = arith.constant 0 : index
    %c0_0 = arith.constant 0 : index
    %0 = vector.load %arg2[%c0, %c0_0] : memref<8x128xf32, #tpu.memory_space<vmem>>, vector<8x128xf32>
    %c0_1 = arith.constant 0 : index
    %c0_2 = arith.constant 0 : index
    %1 = vector.load %arg3[%c0_1, %c0_2] : memref<128x128xf32, #tpu.memory_space<vmem>>, vector<128x128xf32>
    %cst = arith.constant dense<0.000000e+00> : vector<8x128xf32>
    %2 = tpu.matmul %0, %1, %cst {dimension_numbers = #tpu.dot_dimension_numbers<[1], [1], [0], [0], [0, 0, 1, 0], [], []>} : vector<8x128xf32>, vector<128x128xf32>, vector<8x128xf32> -> vector<8x128xf32>
    %c0_3 = arith.constant 0 : index
    %c0_4 = arith.constant 0 : index
    %3 = vector.load %arg4[%c0_3, %c0_4] : memref<1x128xf32, #tpu.memory_space<vmem>>, vector<1x128xf32>
    %4 = vector.broadcast %3 : vector<1x128xf32> to vector<8x128xf32>
    %5 = arith.addf %2, %4 : vector<8x128xf32>
    %c0_5 = arith.constant 0 : index
    %c0_6 = arith.constant 0 : index
    %6 = vector.load %arg5[%c0_5, %c0_6] : memref<8x128xf32, #tpu.memory_space<vmem>>, vector<8x128xf32>
    tpu.vector_store %arg5[%c0_5, %c0_6], %5 {strides = array<i32>} : memref<8x128xf32, #tpu.memory_space<vmem>>, vector<8x128xf32>,
    return
  }
  func.func @transform_0(%arg0: i32, %arg1: i32) -> (i32, i32) {
    %c0_i32 = arith.constant 0 : i32
    %c0_i32_0 = arith.constant 0 : i32
    return %arg0, %c0_i32 : i32, i32
  }
  func.func @transform_1(%arg0: i32, %arg1: i32) -> (i32, i32) {
    %c0_i32 = arith.constant 0 : i32
    %c0_i32_0 = arith.constant 0 : i32
    return %arg1, %c0_i32 : i32, i32
  }
  func.func @transform_2(%arg0: i32, %arg1: i32) -> (i32, i32) {
    %c0_i32 = arith.constant 0 : i32
    %c0_i32_0 = arith.constant 0 : i32
    return %c0_i32, %arg1 : i32, i32
  }
  func.func @transform_3(%arg0: i32, %arg1: i32) -> (i32, i32) {
    %c0_i32 = arith.constant 0 : i32
    return %arg0, %arg1 : i32, i32
  }
}

</mosaic_0001>

<llo_original>
// kernel: tpu_custom_call.1
$region0: #{tpu_custom_call.1}
  #allocation0 [shape = 'u32[]', space=smem, size = 0x4, offset = 0x4, fixed_abs, tag = 'smem constant byte address 0x4 - core index']
  #allocation1 [shape = 'u32[144,128]{1,0:T(1,128)}', space=vmem, size = 0x12000, scoped, tag = 'internal scratch']
  %s0 = inlined_call_operand.hbm [shape: f32[8,128], index: 0, kind: input, shape index: {}]
  %s1 = inlined_call_operand.hbm [shape: f32[128,128], index: 1, kind: input, shape index: {}]
  %s2 = inlined_call_operand.vmem [shape: f32[1,128], index: 2, kind: input, shape index: {}]
  %s3 = inlined_call_operand.hbm [shape: f32[8,128], index: 3, kind: output, shape index: {}]
  %s4 = sld [smem:[#allocation0]]
  $region30: #{tpu_custom_call.1} parent=0
    _
  %s6 = ssub.s32 1, %s4
  %s7 = scalar_select 0, %s6, %s4
  $region1: #{tpu_custom_call.1} parent=0
    #allocation2 [shape = 'u8[4096]{0}', space=vmem, size = 0x1000, scoped, tag = 'input window, operand 0, single buffered']
    #allocation3 [shape = 's32[1]{0}', space=sflag, size = 0x4, scoped, tag = 'scoped memory for tpu_custom_call.1']
    #allocation4 [shape = 's32[1]{0}', space=sflag, size = 0x4, scoped, tag = 'scoped memory for tpu_custom_call.1']
    #allocation5 [shape = 'u8[65536]{0}', space=vmem, size = 0x10000, scoped, tag = 'input window, operand 1, single buffered']
    #allocation6 [shape = 's32[1]{0}', space=sflag, size = 0x4, scoped, tag = 'scoped memory for tpu_custom_call.1']
    #allocation7 [shape = 'u8[4096]{0}', space=vmem, size = 0x1000, scoped, tag = 'output window, operand 0, single buffered']
    %8 = vsyncpa [#allocation3], 0
    %9 = vsyncpa [#allocation6], 0
    %10 = vsyncpa [#allocation4], 0
    // Predicated region
    $region2: #{tpu_custom_call.1} parent=1 // pred_check
      _
    $region3: #{tpu_custom_call.1} parent=1 // pred_check_branch
      %12 = sbr.rel (0) target = $region5
    $region4: #{tpu_custom_call.1} parent=1 // pred_region
      %s14 = ssub.s32 128, 128
      %15 = vsyncadd [#allocation3], %s14
      %s17 = sshll.u32 [#allocation2], 4
      %s18 = int_to_ptr.vmem [resolvable:$true] %s17
      %20 = dma.hbm_to_vmem [thread:$0]  %s0, 128, %s18, [#allocation3]
    $region5: #{tpu_custom_call.1} parent=1 // pred_fallthru
      _
    // Predicated region
    $region6: #{tpu_custom_call.1} parent=1 // pred_check
      _
    $region7: #{tpu_custom_call.1} parent=1 // pred_check_branch
      %22 = sbr.rel (0) target = $region9
    $region8: #{tpu_custom_call.1} parent=1 // pred_region
      %s24 = ssub.s32 2048, 2048
      %25 = vsyncadd [#allocation6], %s24
      %s26 = sshll.u32 [#allocation5], 4
      %s27 = int_to_ptr.vmem [resolvable:$true] %s26
      %32 = dma.hbm_to_vmem [thread:$0]  %s1, 2048, %s27, [#allocation6], 128, 128, 8
    $region9: #{tpu_custom_call.1} parent=1 // pred_fallthru
      _
    // Predicated region
    $region10: #{tpu_custom_call.1} parent=1 // pred_check
      _
    $region11: #{tpu_custom_call.1} parent=1 // pred_check_branch
      %34 = sbr.rel (0) target = $region13
    $region12: #{tpu_custom_call.1} parent=1 // pred_region
      _
    $region13: #{tpu_custom_call.1} parent=1 // pred_fallthru
      _
    // Predicated region
    $region14: #{tpu_custom_call.1} parent=1 // pred_check
      _
    $region15: #{tpu_custom_call.1} parent=1 // pred_check_branch
      %36 = sbr.rel (0) target = $region17
    $region16: #{tpu_custom_call.1} parent=1 // pred_region
      %37 = dma.done [#allocation3], 128
    $region17: #{tpu_custom_call.1} parent=1 // pred_fallthru
      _
    // Predicated region
    $region18: #{tpu_custom_call.1} parent=1 // pred_check
      _
    $region19: #{tpu_custom_call.1} parent=1 // pred_check_branch
      %39 = sbr.rel (0) target = $region21
    $region20: #{tpu_custom_call.1} parent=1 // pred_region
      %40 = dma.done [#allocation6], 2048
    $region21: #{tpu_custom_call.1} parent=1 // pred_fallthru
      _
    %v41 = vld [vmem:[#allocation2] sm:$0xff]
    %v42 = vld [vmem:[#allocation5] sm:$0xff]
    %v43 = vld [vmem:[#allocation5 + $0x8] sm:$0xff]
    %v44 = vld [vmem:[#allocation5 + $0x10] sm:$0xff]
    %v45 = vld [vmem:[#allocation5 + $0x18] sm:$0xff]
    %v46 = vld [vmem:[#allocation5 + $0x20] sm:$0xff]
    %v47 = vld [vmem:[#allocation5 + $0x28] sm:$0xff]
    %v48 = vld [vmem:[#allocation5 + $0x30] sm:$0xff]
    %v49 = vld [vmem:[#allocation5 + $0x38] sm:$0xff]
    %v50 = vld [vmem:[#allocation5 + $0x40] sm:$0xff]
    %v51 = vld [vmem:[#allocation5 + $0x48] sm:$0xff]
    %v52 = vld [vmem:[#allocation5 + $0x50] sm:$0xff]
    %v53 = vld [vmem:[#allocation5 + $0x58] sm:$0xff]
    %v54 = vld [vmem:[#allocation5 + $0x60] sm:$0xff]
    %v55 = vld [vmem:[#allocation5 + $0x68] sm:$0xff]
    %v56 = vld [vmem:[#allocation5 + $0x70] sm:$0xff]
    %v57 = vld [vmem:[#allocation5 + $0x78] sm:$0xff]
    %v58 = vld [vmem:[%s2] sm:$0x1]
    %v60 = vlaneseq
    %v61 = vshrl.u32 %v60, 7
    %v62 = vsub.s32 0, %v61
    %v63 = vrot.slane %v58, %v62
    %65 = vmatprep.subr.mxu0 0.0
    %66 = vmatpush1.xpose.msra.mxu0 %v57
    %67 = vmatprep.subr.mxu0 0.0
    %68 = vmatpush1.xpose.msra.mxu0 %v56
    %69 = vmatprep.subr.mxu0 0.0
    %70 = vmatpush1.xpose.msra.mxu0 %v55
    %71 = vmatprep.subr.mxu0 0.0
    %72 = vmatpush1.xpose.msra.mxu0 %v54
    %73 = vmatprep.subr.mxu0 0.0
    %74 = vmatpush1.xpose.msra.mxu0 %v53
    %75 = vmatprep.subr.mxu0 0.0
    %76 = vmatpush1.xpose.msra.mxu0 %v52
    %77 = vmatprep.subr.mxu0 0.0
    %78 = vmatpush1.xpose.msra.mxu0 %v51
    %79 = vmatprep.subr.mxu0 0.0
    %80 = vmatpush1.xpose.msra.mxu0 %v50
    %81 = vmatprep.subr.mxu0 0.0
    %82 = vmatpush1.xpose.msra.mxu0 %v49
    %83 = vmatprep.subr.mxu0 0.0
    %84 = vmatpush1.xpose.msra.mxu0 %v48
    %85 = vmatprep.subr.mxu0 0.0
    %86 = vmatpush1.xpose.msra.mxu0 %v47
    %87 = vmatprep.subr.mxu0 0.0
    %88 = vmatpush1.xpose.msra.mxu0 %v46
    %89 = vmatprep.subr.mxu0 0.0
    %90 = vmatpush1.xpose.msra.mxu0 %v45
    %91 = vmatprep.subr.mxu0 0.0
    %92 = vmatpush1.xpose.msra.mxu0 %v44
    %93 = vmatprep.subr.mxu0 0.0
    %94 = vmatpush1.xpose.msra.mxu0 %v43
    %95 = vmatprep.subr.mxu0 0.0
    %96 = vmatpush1.xpose.msra.mxu0 %v42
    %97 = vmatprep.subr.mxu0 0.0
    %98 = vmatpush2.xpose.msra.mxu0 0.0
    %99 = vmatprep.subr.mxu0 0.0
    %100 = vmatpush2.xpose.msra.mxu0 0.0
    %101 = vmatprep.subr.mxu0 0.0
    %102 = vmatpush2.xpose.msra.mxu0 0.0
    %103 = vmatprep.subr.mxu0 0.0
    %104 = vmatpush2.xpose.msra.mxu0 0.0
    %105 = vmatprep.subr.mxu0 0.0
    %106 = vmatpush2.xpose.msra.mxu0 0.0
    %107 = vmatprep.subr.mxu0 0.0
    %108 = vmatpush2.xpose.msra.mxu0 0.0
    %109 = vmatprep.subr.mxu0 0.0
    %110 = vmatpush2.xpose.msra.mxu0 0.0
    %111 = vmatprep.subr.mxu0 0.0
    %112 = vmatpush2.xpose.msra.mxu0 0.0
    %113 = vmatprep.subr.mxu0 0.0
    %114 = vmatpush2.xpose.msra.mxu0 0.0
    %115 = vmatprep.subr.mxu0 0.0
    %116 = vmatpush2.xpose.msra.mxu0 0.0
    %117 = vmatprep.subr.mxu0 0.0
    %118 = vmatpush2.xpose.msra.mxu0 0.0
    %119 = vmatprep.subr.mxu0 0.0
    %120 = vmatpush2.xpose.msra.mxu0 0.0
    %121 = vmatprep.subr.mxu0 0.0
    %122 = vmatpush2.xpose.msra.mxu0 0.0
    %123 = vmatprep.subr.mxu0 0.0
    %124 = vmatpush2.xpose.msra.mxu0 0.0
    %125 = vmatprep.subr.mxu0 0.0
    %126 = vmatpush2.xpose.msra.mxu0 0.0
    %127 = vmatprep.subr.mxu0 0.0
    %128 = vmatpush2.xpose.msra.mxu0 0.0
    %129 = vmatprep.mubr.f32.mxu0 0.0
    %130 = vmatmul.mubr.f32.gmra.mxu0 %v41
    %v131 = vpop.f32.mrf.mxu0
    %v132 = vadd.f32 %v63, %v131
    %v133 = vpop.f32.mrf.mxu0
    %134 = vdwg.mxu0
    %135 = vst [vmem:[#allocation7] sm:$0xff] %v132
    // Predicated region
    $region22: #{tpu_custom_call.1} parent=1 // pred_check
      _
    $region23: #{tpu_custom_call.1} parent=1 // pred_check_branch
      %137 = sbr.rel (0) target = $region25
    $region24: #{tpu_custom_call.1} parent=1 // pred_region
      %s139 = ssub.s32 128, 128
      %140 = vsyncadd [#allocation4], %s139
      %s142 = sshll.u32 [#allocation7], 4
      %s143 = int_to_ptr.vmem [resolvable:$true] %s142
      %145 = dma.vmem_to_hbm [thread:$0]  %s143, 128, %s3, [#allocation4]
    $region25: #{tpu_custom_call.1} parent=1 // pred_fallthru
      _
    // Predicated region
    $region26: #{tpu_custom_call.1} parent=1 // pred_check
      _
    $region27: #{tpu_custom_call.1} parent=1 // pred_check_branch
      %147 = sbr.rel (0) target = $region29
    $region28: #{tpu_custom_call.1} parent=1 // pred_region
      %148 = dma.done [#allocation4], 128
    $region29: #{tpu_custom_call.1} parent=1 // pred_fallthru
      _
    %149 = vsyncpa [#allocation3], 1
    %150 = vsyncpa [#allocation6], 1
    %151 = vsyncpa [#allocation4], 1

</llo_original>
